<compile_context>
chip_gen: v7x
topology: tpu7x:2x2x1
jax: 0.10.0
libtpu: 0.0.40
codegen_flags: <defaults>
</compile_context>

<pallas_src>
import numpy as np
import jax
import jax.numpy as jnp
from jax.experimental import pallas as pl
from jax.experimental.pallas import tpu as pltpu

BN_EPS = 1e-5


# ---------------------------------------------------------------------------
# Kernels
# ---------------------------------------------------------------------------
def _conv3x3_relu_stats_kernel(xp_ref, w_ref, b_ref, y_ref, s_ref, ss_ref):
    """3x3 'same' conv + bias + ReLU on one zero-padded NHWC image, with a fused
    per-channel sum / sum-of-squares epilogue (for BatchNorm batch statistics).

    xp_ref: (1, H+2, W+2, Cin)   zero-padded input image
    w_ref : (9, Cin, Cout)       tap-major weights, tap index = dy*3 + dx
    b_ref : (1, Cout)
    y_ref : (1, H, W, Cout)      relu(conv(x) + b)
    s_ref : (1, 1, Cout)         sum_{h,w} y
    ss_ref: (1, 1, Cout)         sum_{h,w} y*y
    """
    H, W, Cout = y_ref.shape[1], y_ref.shape[2], y_ref.shape[3]
    bias = b_ref[...]                                  # (1, Cout)

    def row_body(h, carry):
        s, ss = carry
        rows = (xp_ref[0, h], xp_ref[0, h + 1], xp_ref[0, h + 2])   # each (W+2, Cin)
        acc = jnp.zeros((W, Cout), jnp.float32)
        for dy in range(3):
            for dx in range(3):
                acc = acc + jnp.dot(rows[dy][dx:dx + W, :], w_ref[dy * 3 + dx],
                                    preferred_element_type=jnp.float32)
        z = jnp.maximum(acc + bias, 0.0)               # (W, Cout)
        y_ref[0, h] = z.astype(y_ref.dtype)
        s = s + jnp.sum(z, axis=0, keepdims=True)
        ss = ss + jnp.sum(z * z, axis=0, keepdims=True)
        return s, ss

    zero = jnp.zeros((1, Cout), jnp.float32)
    s, ss = jax.lax.fori_loop(0, H, row_body, (zero, zero))
    s_ref[0] = s
    ss_ref[0] = ss


def _bn_maxpool_kernel(y_ref, sc_ref, sh_ref, ftr_ref, pool_ref):
    """Apply BatchNorm scale/shift and 2x2 max-pool in one pass over one image.

    y_ref   : (1, Ho, 2, Wo, 2*C) view of (H, W, C): [ho, r, wo, p*C+c] = y[2ho+r, 2wo+p, c]
    sc_ref  : (1, 2*C)  per-channel scale, tiled over the column-pair axis
    sh_ref  : (1, 2*C)  per-channel shift, tiled over the column-pair axis
    ftr_ref : (1, Ho, 2, Wo, 2*C)  normalized features (same view)
    pool_ref: (1, Ho, Wo, C)       2x2 max-pooled normalized features
    """
    C = pool_ref.shape[3]
    z = y_ref[0] * sc_ref[...] + sh_ref[...]           # (Ho, 2, Wo, 2C)
    ftr_ref[0] = z.astype(ftr_ref.dtype)
    m = jnp.maximum(z[:, 0], z[:, 1])                  # max over row pair -> (Ho, Wo, 2C)
    pool_ref[0] = jnp.maximum(m[:, :, :C], m[:, :, C:]).astype(pool_ref.dtype)


# ---------------------------------------------------------------------------
# Wrappers around pallas_call
# ---------------------------------------------------------------------------
def conv3x3_relu(x_nhwc, w9, bias):
    """3x3 'same' conv + bias + ReLU; returns (y, per-image channel sum, sum-of-squares)."""
    N, H, W, Cin = x_nhwc.shape
    Cout = w9.shape[2]
    xp = jnp.pad(x_nhwc, ((0, 0), (1, 1), (1, 1), (0, 0)))
    return pl.pallas_call(
        _conv3x3_relu_stats_kernel,
        out_shape=(jax.ShapeDtypeStruct((N, H, W, Cout), jnp.float32),
                   jax.ShapeDtypeStruct((N, 1, Cout), jnp.float32),
                   jax.ShapeDtypeStruct((N, 1, Cout), jnp.float32)),
        grid=(N,),
        in_specs=[
            pl.BlockSpec((1, H + 2, W + 2, Cin), lambda n: (n, 0, 0, 0)),
            pl.BlockSpec((9, Cin, Cout), lambda n: (0, 0, 0)),   # weights stay resident
            pl.BlockSpec((1, Cout), lambda n: (0, 0)),
        ],
        out_specs=(
            pl.BlockSpec((1, H, W, Cout), lambda n: (n, 0, 0, 0)),
            pl.BlockSpec((1, 1, Cout), lambda n: (n, 0, 0)),
            pl.BlockSpec((1, 1, Cout), lambda n: (n, 0, 0)),
        ),
        compiler_params=pltpu.CompilerParams(dimension_semantics=("parallel",)),
    )(xp, w9, bias.reshape(1, Cout))


def bn_maxpool2x2(y_nhwc, scale, shift):
    """Fused BatchNorm scale/shift + MaxPool2d(2). Returns (normalized_ftr, pooled)."""
    N, H, W, C = y_nhwc.shape
    assert H % 2 == 0 and W % 2 == 0, "MaxPool2d(2) requires even spatial dims"
    Ho, Wo = H // 2, W // 2
    y5 = y_nhwc.reshape(N, Ho, 2, Wo, 2 * C)           # free, row-major reshape
    sc2 = jnp.tile(scale, 2).reshape(1, 2 * C)         # [w-even chans | w-odd chans]
    sh2 = jnp.tile(shift, 2).reshape(1, 2 * C)
    ftr5, pooled = pl.pallas_call(
        _bn_maxpool_kernel,
        out_shape=(jax.ShapeDtypeStruct((N, Ho, 2, Wo, 2 * C), jnp.float32),
                   jax.ShapeDtypeStruct((N, Ho, Wo, C), jnp.float32)),
        grid=(N,),
        in_specs=[
            pl.BlockSpec((1, Ho, 2, Wo, 2 * C), lambda n: (n, 0, 0, 0, 0)),
            pl.BlockSpec((1, 2 * C), lambda n: (0, 0)),
            pl.BlockSpec((1, 2 * C), lambda n: (0, 0)),
        ],
        out_specs=(
            pl.BlockSpec((1, Ho, 2, Wo, 2 * C), lambda n: (n, 0, 0, 0, 0)),
            pl.BlockSpec((1, Ho, Wo, C), lambda n: (n, 0, 0, 0)),
        ),
        compiler_params=pltpu.CompilerParams(dimension_semantics=("parallel",)),
    )(y5, sc2, sh2)
    return ftr5.reshape(N, H, W, C), pooled


# ---------------------------------------------------------------------------
# Encoder
# ---------------------------------------------------------------------------
def _to_tap_weight(w_oihw):
    # (Cout, Cin, 3, 3) -> (9, Cin, Cout); tap index = dy*3 + dx, matching the kernel loop.
    return jnp.transpose(w_oihw, (2, 3, 1, 0)).reshape(9, w_oihw.shape[1], w_oihw.shape[0])


class EncoderPallas:
    def __init__(self, key, init_filters=8, n_channels=4, depth=3, cf=1):
        self.chs = [n_channels] + [int(init_filters * cf * 2 ** i) for i in range(depth)]
        self.blocks = []
        for i in range(len(self.chs) - 1):
            cin, cout = self.chs[i], self.chs[i + 1]
            key, k1, k2, k3, k4, k5, k6 = jax.random.split(key, 7)
            w1 = jax.random.normal(k1, (cout, cin, 3, 3), jnp.float32) / np.sqrt(9 * cin)
            b1 = 0.05 * jax.random.normal(k2, (cout,), jnp.float32)
            w2 = jax.random.normal(k3, (cout, cout, 3, 3), jnp.float32) / np.sqrt(9 * cout)
            b2 = 0.05 * jax.random.normal(k4, (cout,), jnp.float32)
            gamma = 1.0 + 0.1 * jax.random.normal(k5, (cout,), jnp.float32)
            beta = 0.1 * jax.random.normal(k6, (cout,), jnp.float32)
            self.blocks.append(dict(
                w1=w1, b1=b1, w2=w2, b2=b2, gamma=gamma, beta=beta,
                w1_9=_to_tap_weight(w1), w2_9=_to_tap_weight(w2)))

    def __call__(self, x_nchw):
        x = jnp.transpose(x_nchw, (0, 2, 3, 1)).astype(jnp.float32)   # NCHW -> NHWC
        ftrs = []
        for p in self.blocks:
            y1, _, _ = conv3x3_relu(x, p['w1_9'], p['b1'])            # relu(conv1(x))
            y2, s, ss = conv3x3_relu(y1, p['w2_9'], p['b2'])          # relu(conv2(.)) + stats
            n, h, w, c = y2.shape
            m = n * h * w
            mean = jnp.sum(s, axis=(0, 1)) / m                        # (C,) batch mean
            var = jnp.maximum(jnp.sum(ss, axis=(0, 1)) / m - mean * mean, 0.0)  # biased var
            scale = p['gamma'] * jax.lax.rsqrt(var + BN_EPS)
            shift = p['beta'] - mean * scale
            # TODO(synk): BatchNorm running_mean/running_var buffer updates (train-time side
            # effect) are not materialized; normalization uses batch stats like PyTorch train mode.
            ftr, x = bn_maxpool2x2(y2, scale, shift)
            ftrs.append(jnp.transpose(ftr, (0, 3, 1, 2)))             # NCHW, like PyTorch ftrs
        return jnp.transpose(x, (0, 3, 1, 2)), ftrs


# ---------------------------------------------------------------------------
# Pure-JAX reference (for correctness check)
# ---------------------------------------------------------------------------
def _ref_forward(x_nchw, blocks):
    def conv(x, w, b):
        y = jax.lax.conv_general_dilated(
            x, w, window_strides=(1, 1), padding='SAME',
            dimension_numbers=('NCHW', 'OIHW', 'NCHW'))
        return y + b[None, :, None, None]

    x = x_nchw
    ftrs = []
    for p in blocks:
        y = jnp.maximum(conv(x, p['w1'], p['b1']), 0.0)
        y = jnp.maximum(conv(y, p['w2'], p['b2']), 0.0)
        mean = jnp.mean(y, axis=(0, 2, 3), keepdims=True)
        var = jnp.var(y, axis=(0, 2, 3), keepdims=True)   # biased, train-mode BN
        y = (y - mean) / jnp.sqrt(var + BN_EPS)
        y = y * p['gamma'][None, :, None, None] + p['beta'][None, :, None, None]
        ftrs.append(y)
        N, C, H, W = y.shape
        x = y.reshape(N, C, H // 2, 2, W // 2, 2).max(axis=(3, 5))
    return x, ftrs


if __name__ == "__main__":
    key = jax.random.PRNGKey(0)
    kp, kx = jax.random.split(key)

    # Small shapes consistent with the module: init_filters=8, n_channels=4, depth=3
    enc = EncoderPallas(kp, init_filters=8, n_channels=4, depth=3, cf=1)
    x = jax.random.normal(kx, (2, 4, 16, 16), jnp.float32)  # NCHW, like PyTorch

    out, ftrs = enc(x)
    out = jax.block_until_ready(out)
    ftrs = [jax.block_until_ready(f) for f in ftrs]

    ref_out, ref_ftrs = _ref_forward(x, enc.blocks)
    np.testing.assert_allclose(np.asarray(out), np.asarray(ref_out), rtol=1e-3, atol=1e-3)
    for f, rf in zip(ftrs, ref_ftrs):
        np.testing.assert_allclose(np.asarray(f), np.asarray(rf), rtol=1e-3, atol=1e-3)

    print("KERNEL_OK")
</pallas_src>

<mosaic_0001>
module attributes {stable_mosaic.version = 11 : i64} {
  func.func @_conv3x3_relu_stats_kernel(%arg0: i32, %arg1: memref<1x18x18x4xf32, #tpu.memory_space<vmem>>, %arg2: memref<9x4x8xf32, #tpu.memory_space<vmem>>, %arg3: memref<1x8xf32, #tpu.memory_space<vmem>>, %arg4: memref<1x16x16x8xf32, #tpu.memory_space<vmem>>, %arg5: memref<1x1x8xf32, #tpu.memory_space<vmem>>, %arg6: memref<1x1x8xf32, #tpu.memory_space<vmem>>) attributes {dimension_semantics = [#tpu.dimension_semantics<parallel>], iteration_bounds = array<i64: 2>, scalar_prefetch = 0 : i64, scratch_operands = 0 : i64, tpu.core_type = #tpu.core_type<tc>, window_params = [{transform_indices = @transform_0, window_bounds = array<i64: 1, 18, 18, 4>}, {pipeline_mode = #tpu.pipeline_mode<synchronous>, transform_indices = @transform_1, window_bounds = array<i64: 9, 4, 8>}, {pipeline_mode = #tpu.pipeline_mode<synchronous>, transform_indices = @transform_2, window_bounds = array<i64: 1, 8>}, {transform_indices = @transform_3, window_bounds = array<i64: 1, 16, 16, 8>}, {transform_indices = @transform_4, window_bounds = array<i64: 1, 1, 8>}, {transform_indices = @transform_5, window_bounds = array<i64: 1, 1, 8>}]} {
    %c0 = arith.constant 0 : index
    %c0_0 = arith.constant 0 : index
    %0 = vector.load %arg3[%c0, %c0_0] : memref<1x8xf32, #tpu.memory_space<vmem>>, vector<1x8xf32>
    %cst = arith.constant 0.000000e+00 : f32
    %1 = vector.broadcast %cst : f32 to vector<1x8xf32>
    %c0_i32 = arith.constant 0 : i32
    %c16_i32 = arith.constant 16 : i32
    %2 = arith.addi %c0_i32, %c16_i32 : i32
    %c1_i32 = arith.constant 1 : i32
    %3:2 = scf.for %arg7 = %c0_i32 to %2 step %c1_i32 iter_args(%arg8 = %1, %arg9 = %1) -> (vector<1x8xf32>, vector<1x8xf32>)  : i32 {
      %c0_8 = arith.constant 0 : index
      %10 = arith.index_cast %arg7 : i32 to index
      %c0_9 = arith.constant 0 : index
      %c0_10 = arith.constant 0 : index
      %11 = vector.load %arg1[%c0_8, %10, %c0_9, %c0_10] : memref<1x18x18x4xf32, #tpu.memory_space<vmem>>, vector<1x1x18x4xf32>
      %12 = vector.shape_cast %11 : vector<1x1x18x4xf32> to vector<18x4xf32>
      %c1_i32_11 = arith.constant 1 : i32
      %13 = arith.addi %arg7, %c1_i32_11 : i32
      %c0_12 = arith.constant 0 : index
      %14 = arith.index_cast %13 : i32 to index
      %c0_13 = arith.constant 0 : index
      %c0_14 = arith.constant 0 : index
      %15 = vector.load %arg1[%c0_12, %14, %c0_13, %c0_14] : memref<1x18x18x4xf32, #tpu.memory_space<vmem>>, vector<1x1x18x4xf32>
      %16 = vector.shape_cast %15 : vector<1x1x18x4xf32> to vector<18x4xf32>
      %c2_i32 = arith.constant 2 : i32
      %17 = arith.addi %arg7, %c2_i32 : i32
      %c0_15 = arith.constant 0 : index
      %18 = arith.index_cast %17 : i32 to index
      %c0_16 = arith.constant 0 : index
      %c0_17 = arith.constant 0 : index
      %19 = vector.load %arg1[%c0_15, %18, %c0_16, %c0_17] : memref<1x18x18x4xf32, #tpu.memory_space<vmem>>, vector<1x1x18x4xf32>
      %20 = vector.shape_cast %19 : vector<1x1x18x4xf32> to vector<18x4xf32>
      %cst_18 = arith.constant 0.000000e+00 : f32
      %21 = vector.broadcast %cst_18 : f32 to vector<16x8xf32>
      %22 = vector.extract_strided_slice %12 {offsets = [0, 0], sizes = [16, 4], strides = [1, 1]} : vector<18x4xf32> to vector<16x4xf32>
      %c0_19 = arith.constant 0 : index
      %c0_20 = arith.constant 0 : index
      %c0_21 = arith.constant 0 : index
      %23 = vector.load %arg2[%c0_19, %c0_20, %c0_21] : memref<9x4x8xf32, #tpu.memory_space<vmem>>, vector<1x4x8xf32>
      %24 = vector.shape_cast %23 : vector<1x4x8xf32> to vector<4x8xf32>
      %cst_22 = arith.constant dense<0.000000e+00> : vector<16x8xf32>
      %25 = tpu.matmul %22, %24, %cst_22 {dimension_numbers = #tpu.dot_dimension_numbers<[1], [0], [0], [1], [0, 0, 1, 1], [], []>} : vector<16x4xf32>, vector<4x8xf32>, vector<16x8xf32> -> vector<16x8xf32>
      %26 = arith.addf %21, %25 : vector<16x8xf32>
      %27 = vector.extract_strided_slice %12 {offsets = [1, 0], sizes = [16, 4], strides = [1, 1]} : vector<18x4xf32> to vector<16x4xf32>
      %c1 = arith.constant 1 : index
      %c0_23 = arith.constant 0 : index
      %c0_24 = arith.constant 0 : index
      %28 = vector.load %arg2[%c1, %c0_23, %c0_24] : memref<9x4x8xf32, #tpu.memory_space<vmem>>, vector<1x4x8xf32>
      %29 = vector.shape_cast %28 : vector<1x4x8xf32> to vector<4x8xf32>
      %cst_25 = arith.constant dense<0.000000e+00> : vector<16x8xf32>
      %30 = tpu.matmul %27, %29, %cst_25 {dimension_numbers = #tpu.dot_dimension_numbers<[1], [0], [0], [1], [0, 0, 1, 1], [], []>} : vector<16x4xf32>, vector<4x8xf32>, vector<16x8xf32> -> vector<16x8xf32>
      %31 = arith.addf %26, %30 : vector<16x8xf32>
      %32 = vector.extract_strided_slice %12 {offsets = [2, 0], sizes = [16, 4], strides = [1, 1]} : vector<18x4xf32> to vector<16x4xf32>
      %c2 = arith.constant 2 : index
      %c0_26 = arith.constant 0 : index
      %c0_27 = arith.constant 0 : index
      %33 = vector.load %arg2[%c2, %c0_26, %c0_27] : memref<9x4x8xf32, #tpu.memory_space<vmem>>, vector<1x4x8xf32>
      %34 = vector.shape_cast %33 : vector<1x4x8xf32> to vector<4x8xf32>
      %cst_28 = arith.constant dense<0.000000e+00> : vector<16x8xf32>
      %35 = tpu.matmul %32, %34, %cst_28 {dimension_numbers = #tpu.dot_dimension_numbers<[1], [0], [0], [1], [0, 0, 1, 1], [], []>} : vector<16x4xf32>, vector<4x8xf32>, vector<16x8xf32> -> vector<16x8xf32>
      %36 = arith.addf %31, %35 : vector<16x8xf32>
      %37 = vector.extract_strided_slice %16 {offsets = [0, 0], sizes = [16, 4], strides = [1, 1]} : vector<18x4xf32> to vector<16x4xf32>
      %c3 = arith.constant 3 : index
      %c0_29 = arith.constant 0 : index
      %c0_30 = arith.constant 0 : index
      %38 = vector.load %arg2[%c3, %c0_29, %c0_30] : memref<9x4x8xf32, #tpu.memory_space<vmem>>, vector<1x4x8xf32>
      %39 = vector.shape_cast %38 : vector<1x4x8xf32> to vector<4x8xf32>
      %cst_31 = arith.constant dense<0.000000e+00> : vector<16x8xf32>
      %40 = tpu.matmul %37, %39, %cst_31 {dimension_numbers = #tpu.dot_dimension_numbers<[1], [0], [0], [1], [0, 0, 1, 1], [], []>} : vector<16x4xf32>, vector<4x8xf32>, vector<16x8xf32> -> vector<16x8xf32>
      %41 = arith.addf %36, %40 : vector<16x8xf32>
      %42 = vector.extract_strided_slice %16 {offsets = [1, 0], sizes = [16, 4], strides = [1, 1]} : vector<18x4xf32> to vector<16x4xf32>
      %c4 = arith.constant 4 : index
      %c0_32 = arith.constant 0 : index
      %c0_33 = arith.constant 0 : index
      %43 = vector.load %arg2[%c4, %c0_32, %c0_33] : memref<9x4x8xf32, #tpu.memory_space<vmem>>, vector<1x4x8xf32>
      %44 = vector.shape_cast %43 : vector<1x4x8xf32> to vector<4x8xf32>
      %cst_34 = arith.constant dense<0.000000e+00> : vector<16x8xf32>
      %45 = tpu.matmul %42, %44, %cst_34 {dimension_numbers = #tpu.dot_dimension_numbers<[1], [0], [0], [1], [0, 0, 1, 1], [], []>} : vector<16x4xf32>, vector<4x8xf32>, vector<16x8xf32> -> vector<16x8xf32>
      %46 = arith.addf %41, %45 : vector<16x8xf32>
      %47 = vector.extract_strided_slice %16 {offsets = [2, 0], sizes = [16, 4], strides = [1, 1]} : vector<18x4xf32> to vector<16x4xf32>
      %c5 = arith.constant 5 : index
      %c0_35 = arith.constant 0 : index
      %c0_36 = arith.constant 0 : index
      %48 = vector.load %arg2[%c5, %c0_35, %c0_36] : memref<9x4x8xf32, #tpu.memory_space<vmem>>, vector<1x4x8xf32>
      %49 = vector.shape_cast %48 : vector<1x4x8xf32> to vector<4x8xf32>
      %cst_37 = arith.constant dense<0.000000e+00> : vector<16x8xf32>
      %50 = tpu.matmul %47, %49, %cst_37 {dimension_numbers = #tpu.dot_dimension_numbers<[1], [0], [0], [1], [0, 0, 1, 1], [], []>} : vector<16x4xf32>, vector<4x8xf32>, vector<16x8xf32> -> vector<16x8xf32>
      %51 = arith.addf %46, %50 : vector<16x8xf32>
      %52 = vector.extract_strided_slice %20 {offsets = [0, 0], sizes = [16, 4], strides = [1, 1]} : vector<18x4xf32> to vector<16x4xf32>
      %c6 = arith.constant 6 : index
      %c0_38 = arith.constant 0 : index
      %c0_39 = arith.constant 0 : index
      %53 = vector.load %arg2[%c6, %c0_38, %c0_39] : memref<9x4x8xf32, #tpu.memory_space<vmem>>, vector<1x4x8xf32>
      %54 = vector.shape_cast %53 : vector<1x4x8xf32> to vector<4x8xf32>
      %cst_40 = arith.constant dense<0.000000e+00> : vector<16x8xf32>
      %55 = tpu.matmul %52, %54, %cst_40 {dimension_numbers = #tpu.dot_dimension_numbers<[1], [0], [0], [1], [0, 0, 1, 1], [], []>} : vector<16x4xf32>, vector<4x8xf32>, vector<16x8xf32> -> vector<16x8xf32>
      %56 = arith.addf %51, %55 : vector<16x8xf32>
      %57 = vector.extract_strided_slice %20 {offsets = [1, 0], sizes = [16, 4], strides = [1, 1]} : vector<18x4xf32> to vector<16x4xf32>
      %c7 = arith.constant 7 : index
      %c0_41 = arith.constant 0 : index
      %c0_42 = arith.constant 0 : index
      %58 = vector.load %arg2[%c7, %c0_41, %c0_42] : memref<9x4x8xf32, #tpu.memory_space<vmem>>, vector<1x4x8xf32>
      %59 = vector.shape_cast %58 : vector<1x4x8xf32> to vector<4x8xf32>
      %cst_43 = arith.constant dense<0.000000e+00> : vector<16x8xf32>
      %60 = tpu.matmul %57, %59, %cst_43 {dimension_numbers = #tpu.dot_dimension_numbers<[1], [0], [0], [1], [0, 0, 1, 1], [], []>} : vector<16x4xf32>, vector<4x8xf32>, vector<16x8xf32> -> vector<16x8xf32>
      %61 = arith.addf %56, %60 : vector<16x8xf32>
      %62 = vector.extract_strided_slice %20 {offsets = [2, 0], sizes = [16, 4], strides = [1, 1]} : vector<18x4xf32> to vector<16x4xf32>
      %c8 = arith.constant 8 : index
      %c0_44 = arith.constant 0 : index
      %c0_45 = arith.constant 0 : index
      %63 = vector.load %arg2[%c8, %c0_44, %c0_45] : memref<9x4x8xf32, #tpu.memory_space<vmem>>, vector<1x4x8xf32>
      %64 = vector.shape_cast %63 : vector<1x4x8xf32> to vector<4x8xf32>
      %cst_46 = arith.constant dense<0.000000e+00> : vector<16x8xf32>
      %65 = tpu.matmul %62, %64, %cst_46 {dimension_numbers = #tpu.dot_dimension_numbers<[1], [0], [0], [1], [0, 0, 1, 1], [], []>} : vector<16x4xf32>, vector<4x8xf32>, vector<16x8xf32> -> vector<16x8xf32>
      %66 = arith.addf %61, %65 : vector<16x8xf32>
      %67 = vector.broadcast %0 : vector<1x8xf32> to vector<16x8xf32>
      %68 = arith.addf %66, %67 : vector<16x8xf32>
      %cst_47 = arith.constant 0.000000e+00 : f32
      %69 = vector.broadcast %cst_47 : f32 to vector<16x8xf32>
      %70 = arith.maximumf %68, %69 : vector<16x8xf32>
      %c0_48 = arith.constant 0 : index
      %71 = arith.index_cast %arg7 : i32 to index
      %c0_49 = arith.constant 0 : index
      %c0_50 = arith.constant 0 : index
      %72 = vector.load %arg4[%c0_48, %71, %c0_49, %c0_50] : memref<1x16x16x8xf32, #tpu.memory_space<vmem>>, vector<1x1x16x8xf32>
      %73 = vector.shape_cast %72 : vector<1x1x16x8xf32> to vector<16x8xf32>
      %74 = vector.shape_cast %70 : vector<16x8xf32> to vector<1x1x16x8xf32>
      tpu.vector_store %arg4[%c0_48, %71, %c0_49, %c0_50], %74 {strides = array<i32>} : memref<1x16x16x8xf32, #tpu.memory_space<vmem>>, vector<1x1x16x8xf32>,
      %cst_51 = arith.constant dense<0.000000e+00> : vector<8xf32>
      %75 = vector.multi_reduction <add>, %70, %cst_51 [0] : vector<16x8xf32> to vector<8xf32>
      %76 = vector.shape_cast %75 : vector<8xf32> to vector<1x8xf32>
      %77 = arith.addf %arg8, %76 : vector<1x8xf32>
      %78 = arith.mulf %70, %70 : vector<16x8xf32>
      %cst_52 = arith.constant dense<0.000000e+00> : vector<8xf32>
      %79 = vector.multi_reduction <add>, %78, %cst_52 [0] : vector<16x8xf32> to vector<8xf32>
      %80 = vector.shape_cast %79 : vector<8xf32> to vector<1x8xf32>
      %81 = arith.addf %arg9, %80 : vector<1x8xf32>
      scf.yield %77, %81 : vector<1x8xf32>, vector<1x8xf32>
    }
    %c16_i32_1 = arith.constant 16 : i32
    %c0_2 = arith.constant 0 : index
    %c0_3 = arith.constant 0 : index
    %c0_4 = arith.constant 0 : index
    %4 = vector.load %arg5[%c0_2, %c0_3, %c0_4] : memref<1x1x8xf32, #tpu.memory_space<vmem>>, vector<1x1x8xf32>
    %5 = vector.shape_cast %4 : vector<1x1x8xf32> to vector<1x8xf32>
    %6 = vector.shape_cast %3#0 : vector<1x8xf32> to vector<1x1x8xf32>
    tpu.vector_store %arg5[%c0_2, %c0_3, %c0_4], %6 {strides = array<i32>} : memref<1x1x8xf32, #tpu.memory_space<vmem>>, vector<1x1x8xf32>,
    %c0_5 = arith.constant 0 : index
    %c0_6 = arith.constant 0 : index
    %c0_7 = arith.constant 0 : index
    %7 = vector.load %arg6[%c0_5, %c0_6, %c0_7] : memref<1x1x8xf32, #tpu.memory_space<vmem>>, vector<1x1x8xf32>
    %8 = vector.shape_cast %7 : vector<1x1x8xf32> to vector<1x8xf32>
    %9 = vector.shape_cast %3#1 : vector<1x8xf32> to vector<1x1x8xf32>
    tpu.vector_store %arg6[%c0_5, %c0_6, %c0_7], %9 {strides = array<i32>} : memref<1x1x8xf32, #tpu.memory_space<vmem>>, vector<1x1x8xf32>,
    return
  }
  func.func @transform_0(%arg0: i32) -> (i32, i32, i32, i32) {
    %c0_i32 = arith.constant 0 : i32
    %c0_i32_0 = arith.constant 0 : i32
    %c0_i32_1 = arith.constant 0 : i32
    %c0_i32_2 = arith.constant 0 : i32
    return %arg0, %c0_i32, %c0_i32_0, %c0_i32_1 : i32, i32, i32, i32
  }
  func.func @transform_1(%arg0: i32) -> (i32, i32, i32) {
    %c0_i32 = arith.constant 0 : i32
    %c0_i32_0 = arith.constant 0 : i32
    %c0_i32_1 = arith.constant 0 : i32
    %c0_i32_2 = arith.constant 0 : i32
    return %c0_i32, %c0_i32_0, %c0_i32_1 : i32, i32, i32
  }
  func.func @transform_2(%arg0: i32) -> (i32, i32) {
    %c0_i32 = arith.constant 0 : i32
    %c0_i32_0 = arith.constant 0 : i32
    %c0_i32_1 = arith.constant 0 : i32
    return %c0_i32, %c0_i32_0 : i32, i32
  }
  func.func @transform_3(%arg0: i32) -> (i32, i32, i32, i32) {
    %c0_i32 = arith.constant 0 : i32
    %c0_i32_0 = arith.constant 0 : i32
    %c0_i32_1 = arith.constant 0 : i32
    %c0_i32_2 = arith.constant 0 : i32
    return %arg0, %c0_i32, %c0_i32_0, %c0_i32_1 : i32, i32, i32, i32
  }
  func.func @transform_4(%arg0: i32) -> (i32, i32, i32) {
    %c0_i32 = arith.constant 0 : i32
    %c0_i32_0 = arith.constant 0 : i32
    %c0_i32_1 = arith.constant 0 : i32
    return %arg0, %c0_i32, %c0_i32_0 : i32, i32, i32
  }
  func.func @transform_5(%arg0: i32) -> (i32, i32, i32) {
    %c0_i32 = arith.constant 0 : i32
    %c0_i32_0 = arith.constant 0 : i32
    %c0_i32_1 = arith.constant 0 : i32
    return %arg0, %c0_i32, %c0_i32_0 : i32, i32, i32
  }
}

</mosaic_0001>

<llo_original>
// kernel: tpu_custom_call.1
$region0: #{tpu_custom_call.1}
  #allocation0 [shape = 'u32[]', space=smem, size = 0x4, offset = 0x4, fixed_abs, tag = 'smem constant byte address 0x4 - core index']
  #allocation1 [shape = 'u32[144,128]{1,0:T(1,128)}', space=vmem, size = 0x12000, scoped, tag = 'internal scratch']
  %s0 = inlined_call_operand.vmem [shape: f32[2,18,18,4], index: 0, kind: input, shape index: {}]
  %s1 = inlined_call_operand.vmem [shape: f32[9,4,8], index: 1, kind: input, shape index: {}]
  %s2 = inlined_call_operand.vmem [shape: f32[1,8], index: 2, kind: input, shape index: {}]
  %s3 = inlined_call_operand.vmem [shape: f32[2,16,16,8], index: 3, kind: output, shape index: {0}]
  %s4 = inlined_call_operand.hbm [shape: f32[2,1,8], index: 4, kind: output, shape index: {1}]
  %s5 = inlined_call_operand.hbm [shape: f32[2,1,8], index: 5, kind: output, shape index: {2}]
  %6 = xla_tuple %s3, %s4, %s5
  %s7 = sld [smem:[#allocation0]]
  $region68: #{tpu_custom_call.1} parent=0
    _
  %s9 = ssub.s32 1, %s7
  %s10 = scalar_select 0, %s9, %s7
  $region1: #{tpu_custom_call.1} parent=0
    #allocation2 [shape = 'u8[1024]{0}', space=vmem, size = 0x400, scoped, tag = 'output window, operand 1']
    #allocation3 [shape = 's32[2]{0}', space=sflag, size = 0x8, scoped, tag = 'scoped memory for tpu_custom_call.1']
    #allocation4 [shape = 'u8[1024]{0}', space=vmem, size = 0x400, scoped, tag = 'output window, operand 2']
    #allocation5 [shape = 's32[2]{0}', space=sflag, size = 0x8, scoped, tag = 'scoped memory for tpu_custom_call.1']
    %11 = vsyncpa [#allocation3], 0
    %s12 = scalar_lea.sflag [#allocation3], 1
    %13 = vsyncpa %s12, 0
    %14 = vsyncpa [#allocation5], 0
    %s15 = scalar_lea.sflag [#allocation5], 1
    %16 = vsyncpa %s15, 0
    loop: start=0, step=1, limit=4
    $region2: #{tpu_custom_call.1} parent=1 // loop_pre_header
      _
    $region3: #{tpu_custom_call.1} parent=1 // loop_header
      %s18 = sphi 0, %s22
      %p19 = scmp.ge.s32.totalorder %s18, 4
      %s28 = sphi 0, %s30
      %s31 = sphi 0, %s28
      %s32 = sphi 0, %s31
      %s48 = sphi 0, %s32
      %s52 = sphi 0, %s52
      %s54 = sphi 0, %s52
      %s55 = sphi 0, %s54
      %s69 = sphi 0, %s55
      %s73 = sphi 0, %s73
      %s75 = sphi 0, %s73
      %s76 = sphi 0, %s75
      %s90 = sphi 0, %s76
      %s96 = sphi 0, %s98
      %s99 = sphi 0, %s96
      %s100 = sphi 0, %s99
      %s116 = sphi 0, %s100
      %s122 = sphi 0, %s124
      %s125 = sphi 0, %s122
      %s126 = sphi 0, %s125
      %s142 = sphi 0, %s126
      %s148 = sphi 0, %s150
      %s151 = sphi 0, %s148
      %s152 = sphi 0, %s151
      %s168 = sphi 0, %s152
    $region4: #{tpu_custom_call.1} parent=1 // loop_header_branch
      %21 = sbr.rel (%p19) target = $region8
    $region5: #{tpu_custom_call.1} parent=1 // loop_body
      %s23 = ssub.s32 %s18, 1
      %s24 = ssub.s32 %s18, 2
      %s25 = sadd.s32 %s18, 1
      %s26 = ssub.s32 %s18, %s25
      %p27 = scmp.eq.s32.totalorder %s26, 0
      %s29 = sadd.s32 %s28, 1
      %s30 = scalar_select %p27, %s28, %s29
      %p33 = pneg %p27
      %p34 = scmp.eq.s32.totalorder %s18, 1
      %p35 = por %p33, %p34
      %p36 = scmp.ne.s32.totalorder %s28, %s31
      %p37 = scmp.eq.s32.totalorder %s18, 0
      %p38 = por %p36, %p37
      %p39 = scmp.ne.s32.totalorder %s28, %s31
      %p40 = scmp.eq.s32.totalorder %s23, 1
      %p41 = por %p39, %p40
      %p42 = scmp.ne.s32.totalorder %s31, %s32
      %p43 = scmp.eq.s32.totalorder %s23, 0
      %p44 = por %p42, %p43
      %p45 = scmp.ne.s32.totalorder %s31, %s32
      %p46 = scmp.eq.s32.totalorder %s24, 1
      %p47 = por %p45, %p46
      %p49 = scmp.ne.s32.totalorder %s32, %s48
      %p50 = scmp.eq.s32.totalorder %s24, 0
      %p51 = por %p49, %p50
      %s53 = sadd.s32 %s52, 1
      %p56 = scmp.eq.s32.totalorder %s18, 1
      %p57 = scmp.ne.s32.totalorder %s52, %s54
      %p58 = scmp.eq.s32.totalorder %s18, 0
      %p59 = por %p57, %p58
      %p60 = scmp.ne.s32.totalorder %s52, %s54
      %p61 = scmp.eq.s32.totalorder %s23, 1
      %p62 = por %p60, %p61
      %p63 = scmp.ne.s32.totalorder %s54, %s55
      %p64 = scmp.eq.s32.totalorder %s23, 0
      %p65 = por %p63, %p64
      %p66 = scmp.ne.s32.totalorder %s54, %s55
      %p67 = scmp.eq.s32.totalorder %s24, 1
      %p68 = por %p66, %p67
      %p70 = scmp.ne.s32.totalorder %s55, %s69
      %p71 = scmp.eq.s32.totalorder %s24, 0
      %p72 = por %p70, %p71
      %s74 = sadd.s32 %s73, 1
      %p77 = scmp.eq.s32.totalorder %s18, 1
      %p78 = scmp.ne.s32.totalorder %s73, %s75
      %p79 = scmp.eq.s32.totalorder %s18, 0
      %p80 = por %p78, %p79
      %p81 = scmp.ne.s32.totalorder %s73, %s75
      %p82 = scmp.eq.s32.totalorder %s23, 1
      %p83 = por %p81, %p82
      %p84 = scmp.ne.s32.totalorder %s75, %s76
      %p85 = scmp.eq.s32.totalorder %s23, 0
      %p86 = por %p84, %p85
      %p87 = scmp.ne.s32.totalorder %s75, %s76
      %p88 = scmp.eq.s32.totalorder %s24, 1
      %p89 = por %p87, %p88
      %p91 = scmp.ne.s32.totalorder %s76, %s90
      %p92 = scmp.eq.s32.totalorder %s24, 0
      %p93 = por %p91, %p92
      %s94 = ssub.s32 %s18, %s25
      %p95 = scmp.eq.s32.totalorder %s94, 0
      %s97 = sadd.s32 %s96, 1
      %s98 = scalar_select %p95, %s96, %s97
      %p101 = pneg %p95
      %p102 = scmp.eq.s32.totalorder %s18, 1
      %p103 = por %p101, %p102
      %p104 = scmp.ne.s32.totalorder %s96, %s99
      %p105 = scmp.eq.s32.totalorder %s18, 0
      %p106 = por %p104, %p105
      %p107 = scmp.ne.s32.totalorder %s96, %s99
      %p108 = scmp.eq.s32.totalorder %s23, 1
      %p109 = por %p107, %p108
      %p110 = scmp.ne.s32.totalorder %s99, %s100
      %p111 = scmp.eq.s32.totalorder %s23, 0
      %p112 = por %p110, %p111
      %p113 = scmp.ne.s32.totalorder %s99, %s100
      %p114 = scmp.eq.s32.totalorder %s24, 1
      %p115 = por %p113, %p114
      %p117 = scmp.ne.s32.totalorder %s100, %s116
      %p118 = scmp.eq.s32.totalorder %s24, 0
      %p119 = por %p117, %p118
      %s120 = ssub.s32 %s18, %s25
      %p121 = scmp.eq.s32.totalorder %s120, 0
      %s123 = sadd.s32 %s122, 1
      %s124 = scalar_select %p121, %s122, %s123
      %p127 = pneg %p121
      %p128 = scmp.eq.s32.totalorder %s18, 1
      %p129 = por %p127, %p128
      %p130 = scmp.ne.s32.totalorder %s122, %s125
      %p131 = scmp.eq.s32.totalorder %s18, 0
      %p132 = por %p130, %p131
      %p133 = scmp.ne.s32.totalorder %s122, %s125
      %p134 = scmp.eq.s32.totalorder %s23, 1
      %p135 = por %p133, %p134
      %p136 = scmp.ne.s32.totalorder %s125, %s126
      %p137 = scmp.eq.s32.totalorder %s23, 0
      %p138 = por %p136, %p137
      %p139 = scmp.ne.s32.totalorder %s125, %s126
      %p140 = scmp.eq.s32.totalorder %s24, 1
      %p141 = por %p139, %p140
      %p143 = scmp.ne.s32.totalorder %s126, %s142
      %p144 = scmp.eq.s32.totalorder %s24, 0
      %p145 = por %p143, %p144
      %s146 = ssub.s32 %s18, %s25
      %p147 = scmp.eq.s32.totalorder %s146, 0
      %s149 = sadd.s32 %s148, 1
      %s150 = scalar_select %p147, %s148, %s149
      %p153 = pneg %p147
      %p154 = scmp.eq.s32.totalorder %s18, 1
      %p155 = por %p153, %p154
      %p156 = scmp.ne.s32.totalorder %s148, %s151
      %p157 = scmp.eq.s32.totalorder %s18, 0
      %p158 = por %p156, %p157
      %p159 = scmp.ne.s32.totalorder %s148, %s151
      %p160 = scmp.eq.s32.totalorder %s23, 1
      %p161 = por %p159, %p160
      %p162 = scmp.ne.s32.totalorder %s151, %s152
      %p163 = scmp.eq.s32.totalorder %s23, 0
      %p164 = por %p162, %p163
      %p165 = scmp.ne.s32.totalorder %s151, %s152
      %p166 = scmp.eq.s32.totalorder %s24, 1
      %p167 = por %p165, %p166
      %p169 = scmp.ne.s32.totalorder %s152, %s168
      %p170 = scmp.eq.s32.totalorder %s24, 0
      %p171 = por %p169, %p170
      %p172 = scmp.le.s32.totalorder 1, %s18
      %p173 = scmp.lt.s32.totalorder %s18, 3
      %p174 = pnand %p172, %p173
      %p175 = pneg %p174
      // Predicated region
      $region9: #{tpu_custom_call.1} parent=5 // pred_check
        _
      $region10: #{tpu_custom_call.1} parent=5 // pred_check_branch
        %177 = sbr.rel (%p174) target = $region12
      $region11: #{tpu_custom_call.1} parent=5 // pred_region
        %s178 = ssub.s32 %s18, 1
        // Predicated region
        $region13: #{tpu_custom_call.1} parent=11 // pred_check
          %p179 = pneg %p65
        $region14: #{tpu_custom_call.1} parent=11 // pred_check_branch
          %181 = sbr.rel (%p179) target = $region16
        $region15: #{tpu_custom_call.1} parent=11 // pred_region
          _
        $region16: #{tpu_custom_call.1} parent=11 // pred_fallthru
          _
        // Predicated region
        $region17: #{tpu_custom_call.1} parent=11 // pred_check
          %p182 = pneg %p86
        $region18: #{tpu_custom_call.1} parent=11 // pred_check_branch
          %184 = sbr.rel (%p182) target = $region20
        $region19: #{tpu_custom_call.1} parent=11 // pred_region
          _
        $region20: #{tpu_custom_call.1} parent=11 // pred_fallthru
          _
      $region12: #{tpu_custom_call.1} parent=5 // pred_fallthru
        _
      %p185 = scmp.lt.s32.totalorder %s18, 2
      // Predicated region
      $region21: #{tpu_custom_call.1} parent=5 // pred_check
        %p186 = pneg %p185
      $region22: #{tpu_custom_call.1} parent=5 // pred_check_branch
        %188 = sbr.rel (%p186) target = $region24
      $region23: #{tpu_custom_call.1} parent=5 // pred_region
        // Predicated region
        $region25: #{tpu_custom_call.1} parent=23 // pred_check
          %p189 = pneg %p38
        $region26: #{tpu_custom_call.1} parent=23 // pred_check_branch
          %191 = sbr.rel (%p189) target = $region28
        $region27: #{tpu_custom_call.1} parent=23 // pred_region
          %p192 = scmp.lt.s32.totalorder %s18, 1
          %s193 = scalar_select %p192, %s18, 1
          %s194 = smul.addr %s193, 54
          %s195 = smul.addr %s194, 8
          %s196 = scalar_lea.vmem %s0, %s195
        $region28: #{tpu_custom_call.1} parent=23 // pred_fallthru
          _
      $region24: #{tpu_custom_call.1} parent=5 // pred_fallthru
        _
      %p197 = scmp.le.s32.totalorder 1, %s18
      %p198 = scmp.lt.s32.totalorder %s18, 3
      %p199 = pnand %p197, %p198
      %p200 = pneg %p199
      // Predicated region
      $region29: #{tpu_custom_call.1} parent=5 // pred_check
        _
      $region30: #{tpu_custom_call.1} parent=5 // pred_check_branch
        %202 = sbr.rel (%p199) target = $region32
      $region31: #{tpu_custom_call.1} parent=5 // pred_region
        %s203 = ssub.s32 %s18, 1
        %p204 = scmp.lt.s32.totalorder %s23, 1
        %s205 = scalar_select %p204, %s23, 1
        %s206 = smul.addr %s205, 54
        %s207 = smul.addr %s206, 8
        %s208 = scalar_lea.vmem %s0, %s207
        %p209 = pneg %p44
        %p210 = pneg %p41
        %p211 = pneg %p65
        %p212 = pneg %p62
        %p213 = pneg %p86
        %p214 = pneg %p83
        %p215 = pneg %p112
        %p216 = pneg %p109
        %p217 = scmp.lt.s32.totalorder %s23, 1
        %s218 = scalar_select %p217, %s23, 1
        %s219 = smul.addr %s218, 32
        %s220 = smul.addr %s219, 8
        %s221 = scalar_lea.vmem %s3, %s220
        %p222 = pneg %p138
        %p223 = pneg %p135
        %s224 = sand.u32 %s125, 1
        %s225 = scalar_lea.sflag [#allocation3], %s224
        %s226 = sand.u32 %s125, 1
        %s227 = scalar_lea.vmem [#allocation2], %s226
        %p228 = pneg %p164
        %p229 = pneg %p161
        %s230 = sand.u32 %s151, 1
        %s231 = scalar_lea.sflag [#allocation5], %s230
        %s232 = sand.u32 %s151, 1
        %s233 = scalar_lea.vmem [#allocation4], %s232
        %p234 = scmp.lt.s32.totalorder %s23, 1
        %s235 = scalar_select %p234, %s23, 1
        %s236 = smul.addr %s235, 54
        %s237 = smul.addr %s236, 8
        %s238 = scalar_lea.vmem %s0, %s237
        %p239 = scmp.lt.s32.totalorder %s23, 1
        %s240 = scalar_select %p239, %s23, 1
        %s241 = smul.addr %s240, 32
        %s242 = smul.addr %s241, 8
        %s243 = scalar_lea.vmem %s3, %s242
        %v244 = vld [vmem:[%s2] sm:$0x1]
        loop: start=0, step=1, limit=16
        $region33: #{tpu_custom_call.1} parent=31 // loop_pre_header
          _
        $region34: #{tpu_custom_call.1} parent=31 // loop_header
          %s246 = sphi 0, %s250
          %p247 = scmp.ge.s32.totalorder %s246, 16
          %v251 = vphi 0.0, %v1106
          %v252 = vphi 0.0, %v1118
        $region35: #{tpu_custom_call.1} parent=31 // loop_header_branch
          %249 = sbr.rel (%p247) target = $region39
        $region36: #{tpu_custom_call.1} parent=31 // loop_body
          %s253 = smul.u32 %s246, 24
          %s254 = scalar_lea.vmem %s238, %s253
          %v255 = vld [vmem:[%s254] sm:$0xff]
          %v256 = vld [vmem:[%s254 + $0x8] sm:$0xff]
          %v257 = vld [vmem:[%s254 + $0x10] sm:$0x3]
          %s258 = sadd.s32 %s246, 1
          %s259 = smul.u32 %s258, 24
          %s260 = scalar_lea.vmem %s238, %s259
          %v261 = vld [vmem:[%s260] sm:$0xff]
          %v262 = vld [vmem:[%s260 + $0x8] sm:$0xff]
          %v263 = vld [vmem:[%s260 + $0x10] sm:$0x3]
          %s264 = sadd.s32 %s246, 2
          %s265 = smul.u32 %s264, 24
          %s266 = scalar_lea.vmem %s238, %s265
          %v267 = vld [vmem:[%s266] sm:$0xff]
          %v268 = vld [vmem:[%s266 + $0x8] sm:$0xff]
          %v269 = vld [vmem:[%s266 + $0x10] sm:$0x3]
          %v270 = vld [vmem:[%s1] sm:$0xf]
          %s271 = scalar_lea.vmem %s1, 4
          %v272 = vld [vmem:[%s271] sm:$0xf]
          %vm276 = vcmask 1046528
          %v277 = vrot.slane %v255, 1
          %v278 = vrot.slane %v256, 1
          %v279 = vsel %vm276, %v277, %v278
          %v280 = vrot.slane %v257, 1
          %v281 = vsel %vm276, %v278, %v280
          %vm282 = vcmask 31744
          %v283 = vsel %vm282, %v279, 0
          %v285 = vsel %vm282, %v281, 0
          %vm287 = vcmask 1043456
          %v289 = vsel %vm287, %v272, 0
          %291 = vmatprep.subr.mxu0 0.0
          %292 = vmatpush1.msra.mxu0 %v289
          %293 = vmatprep.subr.mxu0 0.0
          %294 = vmatpush1.msra.mxu0 0.0
          %295 = vmatprep.subr.mxu0 0.0
          %296 = vmatpush1.msra.mxu0 0.0
          %297 = vmatprep.subr.mxu0 0.0
          %298 = vmatpush1.msra.mxu0 0.0
          %299 = vmatprep.subr.mxu0 0.0
          %300 = vmatpush1.msra.mxu0 0.0
          %301 = vmatprep.subr.mxu0 0.0
          %302 = vmatpush1.msra.mxu0 0.0
          %303 = vmatprep.subr.mxu0 0.0
          %304 = vmatpush1.msra.mxu0 0.0
          %305 = vmatprep.subr.mxu0 0.0
          %306 = vmatpush1.msra.mxu0 0.0
          %307 = vmatprep.subr.mxu0 0.0
          %308 = vmatpush1.msra.mxu0 0.0
          %309 = vmatprep.subr.mxu0 0.0
          %310 = vmatpush1.msra.mxu0 0.0
          %311 = vmatprep.subr.mxu0 0.0
          %312 = vmatpush1.msra.mxu0 0.0
          %313 = vmatprep.subr.mxu0 0.0
          %314 = vmatpush1.msra.mxu0 0.0
          %315 = vmatprep.subr.mxu0 0.0
          %316 = vmatpush1.msra.mxu0 0.0
          %317 = vmatprep.subr.mxu0 0.0
          %318 = vmatpush1.msra.mxu0 0.0
          %319 = vmatprep.subr.mxu0 0.0
          %320 = vmatpush1.msra.mxu0 0.0
          %321 = vmatprep.subr.mxu0 0.0
          %322 = vmatpush1.msra.mxu0 0.0
          %323 = vmatprep.subr.mxu0 0.0
          %324 = vmatpush1.msra.mxu0 0.0
          %325 = vmatprep.subr.mxu0 0.0
          %326 = vmatpush1.msra.mxu0 0.0
          %327 = vmatprep.subr.mxu0 0.0
          %328 = vmatpush1.msra.mxu0 0.0
          %329 = vmatprep.subr.mxu0 0.0
          %330 = vmatpush1.msra.mxu0 0.0
          %331 = vmatprep.subr.mxu0 0.0
          %332 = vmatpush1.msra.mxu0 0.0
          %333 = vmatprep.subr.mxu0 0.0
          %334 = vmatpush1.msra.mxu0 0.0
          %335 = vmatprep.subr.mxu0 0.0
          %336 = vmatpush1.msra.mxu0 0.0
          %337 = vmatprep.subr.mxu0 0.0
          %338 = vmatpush1.msra.mxu0 0.0
          %339 = vmatprep.subr.mxu0 0.0
          %340 = vmatpush1.msra.mxu0 0.0
          %341 = vmatprep.subr.mxu0 0.0
          %342 = vmatpush1.msra.mxu0 0.0
          %343 = vmatprep.subr.mxu0 0.0
          %344 = vmatpush1.msra.mxu0 0.0
          %345 = vmatprep.subr.mxu0 0.0
          %346 = vmatpush1.msra.mxu0 0.0
          %347 = vmatprep.subr.mxu0 0.0
          %348 = vmatpush1.msra.mxu0 0.0
          %349 = vmatprep.subr.mxu0 0.0
          %350 = vmatpush1.msra.mxu0 0.0
          %351 = vmatprep.subr.mxu0 0.0
          %352 = vmatpush1.msra.mxu0 0.0
          %353 = vmatprep.subr.mxu0 0.0
          %354 = vmatpush1.msra.mxu0 0.0
          %355 = vmatprep.mubr.f32.mxu0 0.0
          %356 = vmatmul.mubr.f32.gmra.mrb[0].mxu0 %v283
          %v357 = vpop.f32.mrb[0].mxu0
          %v358 = vadd.f32 0.0, %v357
          %v359 = vpop.f32.mrb[0].mxu0
          %360 = vmatprep.mubr.f32.mxu0 0.0
          %361 = vmatmul.mubr.f32.gmra.mrb[0].mxu0 %v285
          %v362 = vpop.f32.mrb[0].mxu0
          %v363 = vadd.f32 0.0, %v362
          %v364 = vpop.f32.mrb[0].mxu0
          %365 = vdwg.mxu0
          %v366 = vsel %vm282, %v255, 0
          %v368 = vsel %vm282, %v256, 0
          %v371 = vsel %vm287, %v270, 0
          %373 = vmatprep.subr.mxu0 0.0
          %374 = vmatpush1.msra.mxu0 %v371
          %375 = vmatprep.subr.mxu0 0.0
          %376 = vmatpush1.msra.mxu0 0.0
          %377 = vmatprep.subr.mxu0 0.0
          %378 = vmatpush1.msra.mxu0 0.0
          %379 = vmatprep.subr.mxu0 0.0
          %380 = vmatpush1.msra.mxu0 0.0
          %381 = vmatprep.subr.mxu0 0.0
          %382 = vmatpush1.msra.mxu0 0.0
          %383 = vmatprep.subr.mxu0 0.0
          %384 = vmatpush1.msra.mxu0 0.0
          %385 = vmatprep.subr.mxu0 0.0
          %386 = vmatpush1.msra.mxu0 0.0
          %387 = vmatprep.subr.mxu0 0.0
          %388 = vmatpush1.msra.mxu0 0.0
          %389 = vmatprep.subr.mxu0 0.0
          %390 = vmatpush1.msra.mxu0 0.0
          %391 = vmatprep.subr.mxu0 0.0
          %392 = vmatpush1.msra.mxu0 0.0
          %393 = vmatprep.subr.mxu0 0.0
          %394 = vmatpush1.msra.mxu0 0.0
          %395 = vmatprep.subr.mxu0 0.0
          %396 = vmatpush1.msra.mxu0 0.0
          %397 = vmatprep.subr.mxu0 0.0
          %398 = vmatpush1.msra.mxu0 0.0
          %399 = vmatprep.subr.mxu0 0.0
          %400 = vmatpush1.msra.mxu0 0.0
          %401 = vmatprep.subr.mxu0 0.0
          %402 = vmatpush1.msra.mxu0 0.0
          %403 = vmatprep.subr.mxu0 0.0
          %404 = vmatpush1.msra.mxu0 0.0
          %405 = vmatprep.subr.mxu0 0.0
          %406 = vmatpush1.msra.mxu0 0.0
          %407 = vmatprep.subr.mxu0 0.0
          %408 = vmatpush1.msra.mxu0 0.0
          %409 = vmatprep.subr.mxu0 0.0
          %410 = vmatpush1.msra.mxu0 0.0
          %411 = vmatprep.subr.mxu0 0.0
          %412 = vmatpush1.msra.mxu0 0.0
          %413 = vmatprep.subr.mxu0 0.0
          %414 = vmatpush1.msra.mxu0 0.0
          %415 = vmatprep.subr.mxu0 0.0
          %416 = vmatpush1.msra.mxu0 0.0
          %417 = vmatprep.subr.mxu0 0.0
          %418 = vmatpush1.msra.mxu0 0.0
          %419 = vmatprep.subr.mxu0 0.0
          %420 = vmatpush1.msra.mxu0 0.0
          %421 = vmatprep.subr.mxu0 0.0
          %422 = vmatpush1.msra.mxu0 0.0
          %423 = vmatprep.subr.mxu0 0.0
          %424 = vmatpush1.msra.mxu0 0.0
          %425 = vmatprep.subr.mxu0 0.0
          %426 = vmatpush1.msra.mxu0 0.0
          %427 = vmatprep.subr.mxu0 0.0
          %428 = vmatpush1.msra.mxu0 0.0
          %429 = vmatprep.subr.mxu0 0.0
          %430 = vmatpush1.msra.mxu0 0.0
          %431 = vmatprep.subr.mxu0 0.0
          %432 = vmatpush1.msra.mxu0 0.0
          %433 = vmatprep.subr.mxu0 0.0
          %434 = vmatpush1.msra.mxu0 0.0
          %435 = vmatprep.subr.mxu0 0.0
          %436 = vmatpush1.msra.mxu0 0.0
          %437 = vmatprep.mubr.f32.mxu0 0.0
          %438 = vmatmul.mubr.f32.gmra.mrb[0].mxu0 %v366
          %v439 = vpop.f32.mrb[0].mxu0
          %v440 = vadd.f32 %v358, %v439
          %v441 = vpop.f32.mrb[0].mxu0
          %442 = vmatprep.mubr.f32.mxu0 0.0
          %443 = vmatmul.mubr.f32.gmra.mrb[0].mxu0 %v368
          %v444 = vpop.f32.mrb[0].mxu0
          %v445 = vadd.f32 %v363, %v444
          %v446 = vpop.f32.mrb[0].mxu0
          %447 = vdwg.mxu0
          %s448 = scalar_lea.vmem %s1, 8
          %v449 = vld [vmem:[%s448] sm:$0xf]
          %vm450 = vcmask 1045504
          %v451 = vrot.slane %v255, 2
          %v452 = vrot.slane %v256, 2
          %v453 = vsel %vm450, %v451, %v452
          %v454 = vrot.slane %v257, 2
          %v455 = vsel %vm450, %v452, %v454
          %v456 = vsel %vm282, %v453, 0
          %v458 = vsel %vm282, %v455, 0
          %v461 = vsel %vm287, %v449, 0
          %463 = vmatprep.subr.mxu0 0.0
          %464 = vmatpush1.msra.mxu0 %v461
          %465 = vmatprep.subr.mxu0 0.0
          %466 = vmatpush1.msra.mxu0 0.0
          %467 = vmatprep.subr.mxu0 0.0
          %468 = vmatpush1.msra.mxu0 0.0
          %469 = vmatprep.subr.mxu0 0.0
          %470 = vmatpush1.msra.mxu0 0.0
          %471 = vmatprep.subr.mxu0 0.0
          %472 = vmatpush1.msra.mxu0 0.0
          %473 = vmatprep.subr.mxu0 0.0
          %474 = vmatpush1.msra.mxu0 0.0
          %475 = vmatprep.subr.mxu0 0.0
          %476 = vmatpush1.msra.mxu0 0.0
          %477 = vmatprep.subr.mxu0 0.0
          %478 = vmatpush1.msra.mxu0 0.0
          %479 = vmatprep.subr.mxu0 0.0
          %480 = vmatpush1.msra.mxu0 0.0
          %481 = vmatprep.subr.mxu0 0.0
          %482 = vmatpush1.msra.mxu0 0.0
          %483 = vmatprep.subr.mxu0 0.0
          %484 = vmatpush1.msra.mxu0 0.0
          %485 = vmatprep.subr.mxu0 0.0
          %486 = vmatpush1.msra.mxu0 0.0
          %487 = vmatprep.subr.mxu0 0.0
          %488 = vmatpush1.msra.mxu0 0.0
          %489 = vmatprep.subr.mxu0 0.0
          %490 = vmatpush1.msra.mxu0 0.0
          %491 = vmatprep.subr.mxu0 0.0
          %492 = vmatpush1.msra.mxu0 0.0
          %493 = vmatprep.subr.mxu0 0.0
          %494 = vmatpush1.msra.mxu0 0.0
          %495 = vmatprep.subr.mxu0 0.0
          %496 = vmatpush1.msra.mxu0 0.0
          %497 = vmatprep.subr.mxu0 0.0
          %498 = vmatpush1.msra.mxu0 0.0
          %499 = vmatprep.subr.mxu0 0.0
          %500 = vmatpush1.msra.mxu0 0.0
          %501 = vmatprep.subr.mxu0 0.0
          %502 = vmatpush1.msra.mxu0 0.0
          %503 = vmatprep.subr.mxu0 0.0
          %504 = vmatpush1.msra.mxu0 0.0
          %505 = vmatprep.subr.mxu0 0.0
          %506 = vmatpush1.msra.mxu0 0.0
          %507 = vmatprep.subr.mxu0 0.0
          %508 = vmatpush1.msra.mxu0 0.0
          %509 = vmatprep.subr.mxu0 0.0
          %510 = vmatpush1.msra.mxu0 0.0
          %511 = vmatprep.subr.mxu0 0.0
          %512 = vmatpush1.msra.mxu0 0.0
          %513 = vmatprep.subr.mxu0 0.0
          %514 = vmatpush1.msra.mxu0 0.0
          %515 = vmatprep.subr.mxu0 0.0
          %516 = vmatpush1.msra.mxu0 0.0
          %517 = vmatprep.subr.mxu0 0.0
          %518 = vmatpush1.msra.mxu0 0.0
          %519 = vmatprep.subr.mxu0 0.0
          %520 = vmatpush1.msra.mxu0 0.0
          %521 = vmatprep.subr.mxu0 0.0
          %522 = vmatpush1.msra.mxu0 0.0
          %523 = vmatprep.subr.mxu0 0.0
          %524 = vmatpush1.msra.mxu0 0.0
          %525 = vmatprep.subr.mxu0 0.0
          %526 = vmatpush1.msra.mxu0 0.0
          %527 = vmatprep.mubr.f32.mxu0 0.0
          %528 = vmatmul.mubr.f32.gmra.mrb[0].mxu0 %v456
          %v529 = vpop.f32.mrb[0].mxu0
          %v530 = vadd.f32 0.0, %v529
          %v531 = vpop.f32.mrb[0].mxu0
          %532 = vmatprep.mubr.f32.mxu0 0.0
          %533 = vmatmul.mubr.f32.gmra.mrb[0].mxu0 %v458
          %v534 = vpop.f32.mrb[0].mxu0
          %v535 = vadd.f32 0.0, %v534
          %v536 = vpop.f32.mrb[0].mxu0
          %537 = vdwg.mxu0
          %v538 = vadd.f32 %v440, %v530
          %v539 = vadd.f32 %v445, %v535
          %s540 = scalar_lea.vmem %s1, 12
          %v541 = vld [vmem:[%s540] sm:$0xf]
          %v543 = vsel %vm282, %v261, 0
          %v546 = vsel %vm282, %v262, 0
          %v549 = vsel %vm287, %v541, 0
          %551 = vmatprep.subr.mxu0 0.0
          %552 = vmatpush1.msra.mxu0 %v549
          %553 = vmatprep.subr.mxu0 0.0
          %554 = vmatpush1.msra.mxu0 0.0
          %555 = vmatprep.subr.mxu0 0.0
          %556 = vmatpush1.msra.mxu0 0.0
          %557 = vmatprep.subr.mxu0 0.0
          %558 = vmatpush1.msra.mxu0 0.0
          %559 = vmatprep.subr.mxu0 0.0
          %560 = vmatpush1.msra.mxu0 0.0
          %561 = vmatprep.subr.mxu0 0.0
          %562 = vmatpush1.msra.mxu0 0.0
          %563 = vmatprep.subr.mxu0 0.0
          %564 = vmatpush1.msra.mxu0 0.0
          %565 = vmatprep.subr.mxu0 0.0
          %566 = vmatpush1.msra.mxu0 0.0
          %567 = vmatprep.subr.mxu0 0.0
          %568 = vmatpush1.msra.mxu0 0.0
          %569 = vmatprep.subr.mxu0 0.0
          %570 = vmatpush1.msra.mxu0 0.0
          %571 = vmatprep.subr.mxu0 0.0
          %572 = vmatpush1.msra.mxu0 0.0
          %573 = vmatprep.subr.mxu0 0.0
          %574 = vmatpush1.msra.mxu0 0.0
          %575 = vmatprep.subr.mxu0 0.0
          %576 = vmatpush1.msra.mxu0 0.0
          %577 = vmatprep.subr.mxu0 0.0
          %578 = vmatpush1.msra.mxu0 0.0
          %579 = vmatprep.subr.mxu0 0.0
          %580 = vmatpush1.msra.mxu0 0.0
          %581 = vmatprep.subr.mxu0 0.0
          %582 = vmatpush1.msra.mxu0 0.0
          %583 = vmatprep.subr.mxu0 0.0
          %584 = vmatpush1.msra.mxu0 0.0
          %585 = vmatprep.subr.mxu0 0.0
          %586 = vmatpush1.msra.mxu0 0.0
          %587 = vmatprep.subr.mxu0 0.0
          %588 = vmatpush1.msra.mxu0 0.0
          %589 = vmatprep.subr.mxu0 0.0
          %590 = vmatpush1.msra.mxu0 0.0
          %591 = vmatprep.subr.mxu0 0.0
          %592 = vmatpush1.msra.mxu0 0.0
          %593 = vmatprep.subr.mxu0 0.0
          %594 = vmatpush1.msra.mxu0 0.0
          %595 = vmatprep.subr.mxu0 0.0
          %596 = vmatpush1.msra.mxu0 0.0
          %597 = vmatprep.subr.mxu0 0.0
          %598 = vmatpush1.msra.mxu0 0.0
          %599 = vmatprep.subr.mxu0 0.0
          %600 = vmatpush1.msra.mxu0 0.0
          %601 = vmatprep.subr.mxu0 0.0
          %602 = vmatpush1.msra.mxu0 0.0
          %603 = vmatprep.subr.mxu0 0.0
          %604 = vmatpush1.msra.mxu0 0.0
          %605 = vmatprep.subr.mxu0 0.0
          %606 = vmatpush1.msra.mxu0 0.0
          %607 = vmatprep.subr.mxu0 0.0
          %608 = vmatpush1.msra.mxu0 0.0
          %609 = vmatprep.subr.mxu0 0.0
          %610 = vmatpush1.msra.mxu0 0.0
          %611 = vmatprep.subr.mxu0 0.0
          %612 = vmatpush1.msra.mxu0 0.0
          %613 = vmatprep.subr.mxu0 0.0
          %614 = vmatpush1.msra.mxu0 0.0
          %615 = vmatprep.mubr.f32.mxu0 0.0
          %616 = vmatmul.mubr.f32.gmra.mrb[0].mxu0 %v543
          %v617 = vpop.f32.mrb[0].mxu0
          %v618 = vadd.f32 0.0, %v617
          %v619 = vpop.f32.mrb[0].mxu0
          %620 = vmatprep.mubr.f32.mxu0 0.0
          %621 = vmatmul.mubr.f32.gmra.mrb[0].mxu0 %v546
          %v622 = vpop.f32.mrb[0].mxu0
          %v623 = vadd.f32 0.0, %v622
          %v624 = vpop.f32.mrb[0].mxu0
          %625 = vdwg.mxu0
          %v626 = vadd.f32 %v538, %v618
          %v627 = vadd.f32 %v539, %v623
          %s628 = scalar_lea.vmem %s1, 16
          %v629 = vld [vmem:[%s628] sm:$0xf]
          %v631 = vrot.slane %v261, 1
          %v632 = vrot.slane %v262, 1
          %v633 = vsel %vm276, %v631, %v632
          %v634 = vrot.slane %v263, 1
          %v635 = vsel %vm276, %v632, %v634
          %v636 = vsel %vm282, %v633, 0
          %v638 = vsel %vm282, %v635, 0
          %v641 = vsel %vm287, %v629, 0
          %643 = vmatprep.subr.mxu0 0.0
          %644 = vmatpush1.msra.mxu0 %v641
          %645 = vmatprep.subr.mxu0 0.0
          %646 = vmatpush1.msra.mxu0 0.0
          %647 = vmatprep.subr.mxu0 0.0
          %648 = vmatpush1.msra.mxu0 0.0
          %649 = vmatprep.subr.mxu0 0.0
          %650 = vmatpush1.msra.mxu0 0.0
          %651 = vmatprep.subr.mxu0 0.0
          %652 = vmatpush1.msra.mxu0 0.0
          %653 = vmatprep.subr.mxu0 0.0
          %654 = vmatpush1.msra.mxu0 0.0
          %655 = vmatprep.subr.mxu0 0.0
          %656 = vmatpush1.msra.mxu0 0.0
          %657 = vmatprep.subr.mxu0 0.0
          %658 = vmatpush1.msra.mxu0 0.0
          %659 = vmatprep.subr.mxu0 0.0
          %660 = vmatpush1.msra.mxu0 0.0
          %661 = vmatprep.subr.mxu0 0.0
          %662 = vmatpush1.msra.mxu0 0.0
          %663 = vmatprep.subr.mxu0 0.0
          %664 = vmatpush1.msra.mxu0 0.0
          %665 = vmatprep.subr.mxu0 0.0
          %666 = vmatpush1.msra.mxu0 0.0
          %667 = vmatprep.subr.mxu0 0.0
          %668 = vmatpush1.msra.mxu0 0.0
          %669 = vmatprep.subr.mxu0 0.0
          %670 = vmatpush1.msra.mxu0 0.0
          %671 = vmatprep.subr.mxu0 0.0
          %672 = vmatpush1.msra.mxu0 0.0
          %673 = vmatprep.subr.mxu0 0.0
          %674 = vmatpush1.msra.mxu0 0.0
          %675 = vmatprep.subr.mxu0 0.0
          %676 = vmatpush1.msra.mxu0 0.0
          %677 = vmatprep.subr.mxu0 0.0
          %678 = vmatpush1.msra.mxu0 0.0
          %679 = vmatprep.subr.mxu0 0.0
          %680 = vmatpush1.msra.mxu0 0.0
          %681 = vmatprep.subr.mxu0 0.0
          %682 = vmatpush1.msra.mxu0 0.0
          %683 = vmatprep.subr.mxu0 0.0
          %684 = vmatpush1.msra.mxu0 0.0
          %685 = vmatprep.subr.mxu0 0.0
          %686 = vmatpush1.msra.mxu0 0.0
          %687 = vmatprep.subr.mxu0 0.0
          %688 = vmatpush1.msra.mxu0 0.0
          %689 = vmatprep.subr.mxu0 0.0
          %690 = vmatpush1.msra.mxu0 0.0
          %691 = vmatprep.subr.mxu0 0.0
          %692 = vmatpush1.msra.mxu0 0.0
          %693 = vmatprep.subr.mxu0 0.0
          %694 = vmatpush1.msra.mxu0 0.0
          %695 = vmatprep.subr.mxu0 0.0
          %696 = vmatpush1.msra.mxu0 0.0
          %697 = vmatprep.subr.mxu0 0.0
          %698 = vmatpush1.msra.mxu0 0.0
          %699 = vmatprep.subr.mxu0 0.0
          %700 = vmatpush1.msra.mxu0 0.0
          %701 = vmatprep.subr.mxu0 0.0
          %702 = vmatpush1.msra.mxu0 0.0
          %703 = vmatprep.subr.mxu0 0.0
          %704 = vmatpush1.msra.mxu0 0.0
          %705 = vmatprep.subr.mxu0 0.0
          %706 = vmatpush1.msra.mxu0 0.0
          %707 = vmatprep.mubr.f32.mxu0 0.0
          %708 = vmatmul.mubr.f32.gmra.mrb[0].mxu0 %v636
          %v709 = vpop.f32.mrb[0].mxu0
          %v710 = vadd.f32 0.0, %v709
          %v711 = vpop.f32.mrb[0].mxu0
          %712 = vmatprep.mubr.f32.mxu0 0.0
          %713 = vmatmul.mubr.f32.gmra.mrb[0].mxu0 %v638
          %v714 = vpop.f32.mrb[0].mxu0
          %v715 = vadd.f32 0.0, %v714
          %v716 = vpop.f32.mrb[0].mxu0
          %717 = vdwg.mxu0
          %v718 = vadd.f32 %v626, %v710
          %v719 = vadd.f32 %v627, %v715
          %s720 = scalar_lea.vmem %s1, 20
          %v721 = vld [vmem:[%s720] sm:$0xf]
          %v722 = vrot.slane %v261, 2
          %v723 = vrot.slane %v262, 2
          %v724 = vsel %vm450, %v722, %v723
          %v725 = vrot.slane %v263, 2
          %v726 = vsel %vm450, %v723, %v725
          %v727 = vsel %vm282, %v724, 0
          %v729 = vsel %vm282, %v726, 0
          %v732 = vsel %vm287, %v721, 0
          %734 = vmatprep.subr.mxu0 0.0
          %735 = vmatpush1.msra.mxu0 %v732
          %736 = vmatprep.subr.mxu0 0.0
          %737 = vmatpush1.msra.mxu0 0.0
          %738 = vmatprep.subr.mxu0 0.0
          %739 = vmatpush1.msra.mxu0 0.0
          %740 = vmatprep.subr.mxu0 0.0
          %741 = vmatpush1.msra.mxu0 0.0
          %742 = vmatprep.subr.mxu0 0.0
          %743 = vmatpush1.msra.mxu0 0.0
          %744 = vmatprep.subr.mxu0 0.0
          %745 = vmatpush1.msra.mxu0 0.0
          %746 = vmatprep.subr.mxu0 0.0
          %747 = vmatpush1.msra.mxu0 0.0
          %748 = vmatprep.subr.mxu0 0.0
          %749 = vmatpush1.msra.mxu0 0.0
          %750 = vmatprep.subr.mxu0 0.0
          %751 = vmatpush1.msra.mxu0 0.0
          %752 = vmatprep.subr.mxu0 0.0
          %753 = vmatpush1.msra.mxu0 0.0
          %754 = vmatprep.subr.mxu0 0.0
          %755 = vmatpush1.msra.mxu0 0.0
          %756 = vmatprep.subr.mxu0 0.0
          %757 = vmatpush1.msra.mxu0 0.0
          %758 = vmatprep.subr.mxu0 0.0
          %759 = vmatpush1.msra.mxu0 0.0
          %760 = vmatprep.subr.mxu0 0.0
          %761 = vmatpush1.msra.mxu0 0.0
          %762 = vmatprep.subr.mxu0 0.0
          %763 = vmatpush1.msra.mxu0 0.0
          %764 = vmatprep.subr.mxu0 0.0
          %765 = vmatpush1.msra.mxu0 0.0
          %766 = vmatprep.subr.mxu0 0.0
          %767 = vmatpush1.msra.mxu0 0.0
          %768 = vmatprep.subr.mxu0 0.0
          %769 = vmatpush1.msra.mxu0 0.0
          %770 = vmatprep.subr.mxu0 0.0
          %771 = vmatpush1.msra.mxu0 0.0
          %772 = vmatprep.subr.mxu0 0.0
          %773 = vmatpush1.msra.mxu0 0.0
          %774 = vmatprep.subr.mxu0 0.0
          %775 = vmatpush1.msra.mxu0 0.0
          %776 = vmatprep.subr.mxu0 0.0
          %777 = vmatpush1.msra.mxu0 0.0
          %778 = vmatprep.subr.mxu0 0.0
          %779 = vmatpush1.msra.mxu0 0.0
          %780 = vmatprep.subr.mxu0 0.0
          %781 = vmatpush1.msra.mxu0 0.0
          %782 = vmatprep.subr.mxu0 0.0
          %783 = vmatpush1.msra.mxu0 0.0
          %784 = vmatprep.subr.mxu0 0.0
          %785 = vmatpush1.msra.mxu0 0.0
          %786 = vmatprep.subr.mxu0 0.0
          %787 = vmatpush1.msra.mxu0 0.0
          %788 = vmatprep.subr.mxu0 0.0
          %789 = vmatpush1.msra.mxu0 0.0
          %790 = vmatprep.subr.mxu0 0.0
          %791 = vmatpush1.msra.mxu0 0.0
          %792 = vmatprep.subr.mxu0 0.0
          %793 = vmatpush1.msra.mxu0 0.0
          %794 = vmatprep.subr.mxu0 0.0
          %795 = vmatpush1.msra.mxu0 0.0
          %796 = vmatprep.subr.mxu0 0.0
          %797 = vmatpush1.msra.mxu0 0.0
          %798 = vmatprep.mubr.f32.mxu0 0.0
          %799 = vmatmul.mubr.f32.gmra.mrb[0].mxu0 %v727
          %v800 = vpop.f32.mrb[0].mxu0
          %v801 = vadd.f32 0.0, %v800
          %v802 = vpop.f32.mrb[0].mxu0
          %803 = vmatprep.mubr.f32.mxu0 0.0
          %804 = vmatmul.mubr.f32.gmra.mrb[0].mxu0 %v729
          %v805 = vpop.f32.mrb[0].mxu0
          %v806 = vadd.f32 0.0, %v805
          %v807 = vpop.f32.mrb[0].mxu0
          %808 = vdwg.mxu0
          %v809 = vadd.f32 %v718, %v801
          %v810 = vadd.f32 %v719, %v806
          %s811 = scalar_lea.vmem %s1, 24
          %v812 = vld [vmem:[%s811] sm:$0xf]
          %v814 = vsel %vm282, %v267, 0
          %v817 = vsel %vm282, %v268, 0
          %v820 = vsel %vm287, %v812, 0
          %822 = vmatprep.subr.mxu0 0.0
          %823 = vmatpush1.msra.mxu0 %v820
          %824 = vmatprep.subr.mxu0 0.0
          %825 = vmatpush1.msra.mxu0 0.0
          %826 = vmatprep.subr.mxu0 0.0
          %827 = vmatpush1.msra.mxu0 0.0
          %828 = vmatprep.subr.mxu0 0.0
          %829 = vmatpush1.msra.mxu0 0.0
          %830 = vmatprep.subr.mxu0 0.0
          %831 = vmatpush1.msra.mxu0 0.0
          %832 = vmatprep.subr.mxu0 0.0
          %833 = vmatpush1.msra.mxu0 0.0
          %834 = vmatprep.subr.mxu0 0.0
          %835 = vmatpush1.msra.mxu0 0.0
          %836 = vmatprep.subr.mxu0 0.0
          %837 = vmatpush1.msra.mxu0 0.0
          %838 = vmatprep.subr.mxu0 0.0
          %839 = vmatpush1.msra.mxu0 0.0
          %840 = vmatprep.subr.mxu0 0.0
          %841 = vmatpush1.msra.mxu0 0.0
          %842 = vmatprep.subr.mxu0 0.0
          %843 = vmatpush1.msra.mxu0 0.0
          %844 = vmatprep.subr.mxu0 0.0
          %845 = vmatpush1.msra.mxu0 0.0
          %846 = vmatprep.subr.mxu0 0.0
          %847 = vmatpush1.msra.mxu0 0.0
          %848 = vmatprep.subr.mxu0 0.0
          %849 = vmatpush1.msra.mxu0 0.0
          %850 = vmatprep.subr.mxu0 0.0
          %851 = vmatpush1.msra.mxu0 0.0
          %852 = vmatprep.subr.mxu0 0.0
          %853 = vmatpush1.msra.mxu0 0.0
          %854 = vmatprep.subr.mxu0 0.0
          %855 = vmatpush1.msra.mxu0 0.0
          %856 = vmatprep.subr.mxu0 0.0
          %857 = vmatpush1.msra.mxu0 0.0
          %858 = vmatprep.subr.mxu0 0.0
          %859 = vmatpush1.msra.mxu0 0.0
          %860 = vmatprep.subr.mxu0 0.0
          %861 = vmatpush1.msra.mxu0 0.0
          %862 = vmatprep.subr.mxu0 0.0
          %863 = vmatpush1.msra.mxu0 0.0
          %864 = vmatprep.subr.mxu0 0.0
          %865 = vmatpush1.msra.mxu0 0.0
          %866 = vmatprep.subr.mxu0 0.0
          %867 = vmatpush1.msra.mxu0 0.0
          %868 = vmatprep.subr.mxu0 0.0
          %869 = vmatpush1.msra.mxu0 0.0
          %870 = vmatprep.subr.mxu0 0.0
          %871 = vmatpush1.msra.mxu0 0.0
          %872 = vmatprep.subr.mxu0 0.0
          %873 = vmatpush1.msra.mxu0 0.0
          %874 = vmatprep.subr.mxu0 0.0
          %875 = vmatpush1.msra.mxu0 0.0
          %876 = vmatprep.subr.mxu0 0.0
          %877 = vmatpush1.msra.mxu0 0.0
          %878 = vmatprep.subr.mxu0 0.0
          %879 = vmatpush1.msra.mxu0 0.0
          %880 = vmatprep.subr.mxu0 0.0
          %881 = vmatpush1.msra.mxu0 0.0
          %882 = vmatprep.subr.mxu0 0.0
          %883 = vmatpush1.msra.mxu0 0.0
          %884 = vmatprep.subr.mxu0 0.0
          %885 = vmatpush1.msra.mxu0 0.0
          %886 = vmatprep.mubr.f32.mxu0 0.0
          %887 = vmatmul.mubr.f32.gmra.mrb[0].mxu0 %v814
          %v888 = vpop.f32.mrb[0].mxu0
          %v889 = vadd.f32 0.0, %v888
          %v890 = vpop.f32.mrb[0].mxu0
          %891 = vmatprep.mubr.f32.mxu0 0.0
          %892 = vmatmul.mubr.f32.gmra.mrb[0].mxu0 %v817
          %v893 = vpop.f32.mrb[0].mxu0
          %v894 = vadd.f32 0.0, %v893
          %v895 = vpop.f32.mrb[0].mxu0
          %896 = vdwg.mxu0
          %v897 = vadd.f32 %v809, %v889
          %v898 = vadd.f32 %v810, %v894
          %s899 = scalar_lea.vmem %s1, 28
          %v900 = vld [vmem:[%s899] sm:$0xf]
          %v902 = vrot.slane %v267, 1
          %v903 = vrot.slane %v268, 1
          %v904 = vsel %vm276, %v902, %v903
          %v905 = vrot.slane %v269, 1
          %v906 = vsel %vm276, %v903, %v905
          %v907 = vsel %vm282, %v904, 0
          %v909 = vsel %vm282, %v906, 0
          %v912 = vsel %vm287, %v900, 0
          %914 = vmatprep.subr.mxu0 0.0
          %915 = vmatpush1.msra.mxu0 %v912
          %916 = vmatprep.subr.mxu0 0.0
          %917 = vmatpush1.msra.mxu0 0.0
          %918 = vmatprep.subr.mxu0 0.0
          %919 = vmatpush1.msra.mxu0 0.0
          %920 = vmatprep.subr.mxu0 0.0
          %921 = vmatpush1.msra.mxu0 0.0
          %922 = vmatprep.subr.mxu0 0.0
          %923 = vmatpush1.msra.mxu0 0.0
          %924 = vmatprep.subr.mxu0 0.0
          %925 = vmatpush1.msra.mxu0 0.0
          %926 = vmatprep.subr.mxu0 0.0
          %927 = vmatpush1.msra.mxu0 0.0
          %928 = vmatprep.subr.mxu0 0.0
          %929 = vmatpush1.msra.mxu0 0.0
          %930 = vmatprep.subr.mxu0 0.0
          %931 = vmatpush1.msra.mxu0 0.0
          %932 = vmatprep.subr.mxu0 0.0
          %933 = vmatpush1.msra.mxu0 0.0
          %934 = vmatprep.subr.mxu0 0.0
          %935 = vmatpush1.msra.mxu0 0.0
          %936 = vmatprep.subr.mxu0 0.0
          %937 = vmatpush1.msra.mxu0 0.0
          %938 = vmatprep.subr.mxu0 0.0
          %939 = vmatpush1.msra.mxu0 0.0
          %940 = vmatprep.subr.mxu0 0.0
          %941 = vmatpush1.msra.mxu0 0.0
          %942 = vmatprep.subr.mxu0 0.0
          %943 = vmatpush1.msra.mxu0 0.0
          %944 = vmatprep.subr.mxu0 0.0
          %945 = vmatpush1.msra.mxu0 0.0
          %946 = vmatprep.subr.mxu0 0.0
          %947 = vmatpush1.msra.mxu0 0.0
          %948 = vmatprep.subr.mxu0 0.0
          %949 = vmatpush1.msra.mxu0 0.0
          %950 = vmatprep.subr.mxu0 0.0
          %951 = vmatpush1.msra.mxu0 0.0
          %952 = vmatprep.subr.mxu0 0.0
          %953 = vmatpush1.msra.mxu0 0.0
          %954 = vmatprep.subr.mxu0 0.0
          %955 = vmatpush1.msra.mxu0 0.0
          %956 = vmatprep.subr.mxu0 0.0
          %957 = vmatpush1.msra.mxu0 0.0
          %958 = vmatprep.subr.mxu0 0.0
          %959 = vmatpush1.msra.mxu0 0.0
          %960 = vmatprep.subr.mxu0 0.0
          %961 = vmatpush1.msra.mxu0 0.0
          %962 = vmatprep.subr.mxu0 0.0
          %963 = vmatpush1.msra.mxu0 0.0
          %964 = vmatprep.subr.mxu0 0.0
          %965 = vmatpush1.msra.mxu0 0.0
          %966 = vmatprep.subr.mxu0 0.0
          %967 = vmatpush1.msra.mxu0 0.0
          %968 = vmatprep.subr.mxu0 0.0
          %969 = vmatpush1.msra.mxu0 0.0
          %970 = vmatprep.subr.mxu0 0.0
          %971 = vmatpush1.msra.mxu0 0.0
          %972 = vmatprep.subr.mxu0 0.0
          %973 = vmatpush1.msra.mxu0 0.0
          %974 = vmatprep.subr.mxu0 0.0
          %975 = vmatpush1.msra.mxu0 0.0
          %976 = vmatprep.subr.mxu0 0.0
          %977 = vmatpush1.msra.mxu0 0.0
          %978 = vmatprep.mubr.f32.mxu0 0.0
          %979 = vmatmul.mubr.f32.gmra.mrb[0].mxu0 %v907
          %v980 = vpop.f32.mrb[0].mxu0
          %v981 = vadd.f32 0.0, %v980
          %v982 = vpop.f32.mrb[0].mxu0
          %983 = vmatprep.mubr.f32.mxu0 0.0
          %984 = vmatmul.mubr.f32.gmra.mrb[0].mxu0 %v909
          %v985 = vpop.f32.mrb[0].mxu0
          %v986 = vadd.f32 0.0, %v985
          %v987 = vpop.f32.mrb[0].mxu0
          %988 = vdwg.mxu0
          %v989 = vadd.f32 %v897, %v981
          %v990 = vadd.f32 %v898, %v986
          %s991 = scalar_lea.vmem %s1, 32
          %v992 = vld [vmem:[%s991] sm:$0xf]
          %v993 = vrot.slane %v267, 2
          %v994 = vrot.slane %v268, 2
          %v995 = vsel %vm450, %v993, %v994
          %v996 = vrot.slane %v269, 2
          %v997 = vsel %vm450, %v994, %v996
          %v998 = vsel %vm282, %v995, 0
          %v1000 = vsel %vm282, %v997, 0
          %v1003 = vsel %vm287, %v992, 0
          %1005 = vmatprep.subr.mxu0 0.0
          %1006 = vmatpush1.msra.mxu0 %v1003
          %1007 = vmatprep.subr.mxu0 0.0
          %1008 = vmatpush1.msra.mxu0 0.0
          %1009 = vmatprep.subr.mxu0 0.0
          %1010 = vmatpush1.msra.mxu0 0.0
          %1011 = vmatprep.subr.mxu0 0.0
          %1012 = vmatpush1.msra.mxu0 0.0
          %1013 = vmatprep.subr.mxu0 0.0
          %1014 = vmatpush1.msra.mxu0 0.0
          %1015 = vmatprep.subr.mxu0 0.0
          %1016 = vmatpush1.msra.mxu0 0.0
          %1017 = vmatprep.subr.mxu0 0.0
          %1018 = vmatpush1.msra.mxu0 0.0
          %1019 = vmatprep.subr.mxu0 0.0
          %1020 = vmatpush1.msra.mxu0 0.0
          %1021 = vmatprep.subr.mxu0 0.0
          %1022 = vmatpush1.msra.mxu0 0.0
          %1023 = vmatprep.subr.mxu0 0.0
          %1024 = vmatpush1.msra.mxu0 0.0
          %1025 = vmatprep.subr.mxu0 0.0
          %1026 = vmatpush1.msra.mxu0 0.0
          %1027 = vmatprep.subr.mxu0 0.0
          %1028 = vmatpush1.msra.mxu0 0.0
          %1029 = vmatprep.subr.mxu0 0.0
          %1030 = vmatpush1.msra.mxu0 0.0
          %1031 = vmatprep.subr.mxu0 0.0
          %1032 = vmatpush1.msra.mxu0 0.0
          %1033 = vmatprep.subr.mxu0 0.0
          %1034 = vmatpush1.msra.mxu0 0.0
          %1035 = vmatprep.subr.mxu0 0.0
          %1036 = vmatpush1.msra.mxu0 0.0
          %1037 = vmatprep.subr.mxu0 0.0
          %1038 = vmatpush1.msra.mxu0 0.0
          %1039 = vmatprep.subr.mxu0 0.0
          %1040 = vmatpush1.msra.mxu0 0.0
          %1041 = vmatprep.subr.mxu0 0.0
          %1042 = vmatpush1.msra.mxu0 0.0
          %1043 = vmatprep.subr.mxu0 0.0
          %1044 = vmatpush1.msra.mxu0 0.0
          %1045 = vmatprep.subr.mxu0 0.0
          %1046 = vmatpush1.msra.mxu0 0.0
          %1047 = vmatprep.subr.mxu0 0.0
          %1048 = vmatpush1.msra.mxu0 0.0
          %1049 = vmatprep.subr.mxu0 0.0
          %1050 = vmatpush1.msra.mxu0 0.0
          %1051 = vmatprep.subr.mxu0 0.0
          %1052 = vmatpush1.msra.mxu0 0.0
          %1053 = vmatprep.subr.mxu0 0.0
          %1054 = vmatpush1.msra.mxu0 0.0
          %1055 = vmatprep.subr.mxu0 0.0
          %1056 = vmatpush1.msra.mxu0 0.0
          %1057 = vmatprep.subr.mxu0 0.0
          %1058 = vmatpush1.msra.mxu0 0.0
          %1059 = vmatprep.subr.mxu0 0.0
          %1060 = vmatpush1.msra.mxu0 0.0
          %1061 = vmatprep.subr.mxu0 0.0
          %1062 = vmatpush1.msra.mxu0 0.0
          %1063 = vmatprep.subr.mxu0 0.0
          %1064 = vmatpush1.msra.mxu0 0.0
          %1065 = vmatprep.subr.mxu0 0.0
          %1066 = vmatpush1.msra.mxu0 0.0
          %1067 = vmatprep.subr.mxu0 0.0
          %1068 = vmatpush1.msra.mxu0 0.0
          %1069 = vmatprep.mubr.f32.mxu0 0.0
          %1070 = vmatmul.mubr.f32.gmra.mrb[0].mxu0 %v998
          %v1071 = vpop.f32.mrb[0].mxu0
          %v1072 = vadd.f32 0.0, %v1071
          %v1073 = vpop.f32.mrb[0].mxu0
          %1074 = vmatprep.mubr.f32.mxu0 0.0
          %1075 = vmatmul.mubr.f32.gmra.mrb[0].mxu0 %v1000
          %v1076 = vpop.f32.mrb[0].mxu0
          %v1077 = vadd.f32 0.0, %v1076
          %v1078 = vpop.f32.mrb[0].mxu0
          %1079 = vdwg.mxu0
          %v1080 = vadd.f32 %v989, %v1072
          %v1081 = vadd.f32 %v990, %v1077
          %v1083 = vlaneseq
          %v1084 = vshrl.u32 %v1083, 7
          %v1085 = vsub.s32 0, %v1084
          %v1086 = vrot.slane %v244, %v1085
          %v1088 = vadd.f32 %v1080, %v1086
          %v1089 = vadd.f32 %v1081, %v1086
          %v1090 = vmax.f32 %v1088, 0.0
          %v1091 = vmax.f32 %v1089, 0.0
          %s1092 = smul.u32 %s246, 16
          %s1093 = scalar_lea.vmem %s243, %s1092
          %vm1094 = vcmask 64512
          %1095 = vst.msk [vmem:[%s1093] sm:$0xff] %vm1094, %v1090
          %1096 = vst.msk [vmem:[%s1093 + $0x8] sm:$0xff] %vm1094, %v1091
          %v1097 = vsel %vm1094, %v1090, 0.0
          %v1098 = vsel %vm1094, %v1091, 0.0
          %v1099 = vadd.f32 %v1097, %v1098
          %v1100 = vrot.slane %v1099, 4
          %v1101 = vadd.f32 %v1099, %v1100
          %v1102 = vrot.slane %v1101, 2
          %v1103 = vadd.f32 %v1101, %v1102
          %v1104 = vrot.slane %v1103, 1
          %v1105 = vadd.f32 %v1103, %v1104
          %v1106 = vadd.f32 %v251, %v1105
          %v1107 = vmul.f32 %v1090, %v1090
          %v1108 = vmul.f32 %v1091, %v1091
          %v1109 = vsel %vm1094, %v1107, 0.0
          %v1110 = vsel %vm1094, %v1108, 0.0
          %v1111 = vadd.f32 %v1109, %v1110
          %v1112 = vrot.slane %v1111, 4
          %v1113 = vadd.f32 %v1111, %v1112
          %v1114 = vrot.slane %v1113, 2
          %v1115 = vadd.f32 %v1113, %v1114
          %v1116 = vrot.slane %v1115, 1
          %v1117 = vadd.f32 %v1115, %v1116
          %v1118 = vadd.f32 %v252, %v1117
        $region37: #{tpu_custom_call.1} parent=31 // loop_footer
          %s250 = sadd.s32 1, %s246
        $region38: #{tpu_custom_call.1} parent=31 // loop_footer_branch
          %245 = sbr.rel target = $region34
        $region39: #{tpu_custom_call.1} parent=31 // loop_exit
          _
        %vm1119 = vcmask 57344
        %1120 = vst.msk [vmem:[%s227] sm:$0x1] %vm1119, %v251
        %1121 = vst.msk [vmem:[%s233] sm:$0x1] %vm1119, %v252
        %p1122 = scmp.lt.s32.totalorder %s23, 1
        %s1123 = scalar_select %p1122, %s23, 1
        %s1124 = smul.addr %s1123, 32
        %s1125 = smul.addr %s1124, 8
        %s1126 = scalar_lea.vmem %s3, %s1125
        %s1127 = sand.u32 %s125, 1
        %s1128 = scalar_lea.sflag [#allocation3], %s1127
        %s1129 = sand.u32 %s125, 1
        %s1130 = scalar_lea.vmem [#allocation2], %s1129
        %s1131 = sand.u32 %s151, 1
        %s1132 = scalar_lea.sflag [#allocation5], %s1131
        %s1133 = sand.u32 %s151, 1
        %s1134 = scalar_lea.vmem [#allocation4], %s1133
        // Predicated region
        $region40: #{tpu_custom_call.1} parent=31 // pred_check
          %p1135 = pneg %p109
        $region41: #{tpu_custom_call.1} parent=31 // pred_check_branch
          %1137 = sbr.rel (%p1135) target = $region43
        $region42: #{tpu_custom_call.1} parent=31 // pred_region
          _
        $region43: #{tpu_custom_call.1} parent=31 // pred_fallthru
          _
        // Predicated region
        $region44: #{tpu_custom_call.1} parent=31 // pred_check
          %p1138 = pneg %p135
        $region45: #{tpu_custom_call.1} parent=31 // pred_check_branch
          %1140 = sbr.rel (%p1138) target = $region47
        $region46: #{tpu_custom_call.1} parent=31 // pred_region
          %s1142 = ssub.s32 16, 16
          %1143 = vsyncadd %s1128, %s1142
          %s1144 = smul.addr %s23, 16
          %s1145 = scalar_lea.hbm %s4, %s1144
          %s1147 = sshll.u32 %s1130, 4
          %s1148 = int_to_ptr.vmem [resolvable:$true] %s1147
          %1150 = dma.vmem_to_hbm [thread:$0]  %s1148, 16, %s1145, %s1128
        $region47: #{tpu_custom_call.1} parent=31 // pred_fallthru
          _
        // Predicated region
        $region48: #{tpu_custom_call.1} parent=31 // pred_check
          %p1151 = pneg %p161
        $region49: #{tpu_custom_call.1} parent=31 // pred_check_branch
          %1153 = sbr.rel (%p1151) target = $region51
        $region50: #{tpu_custom_call.1} parent=31 // pred_region
          %s1155 = ssub.s32 16, 16
          %1156 = vsyncadd %s1132, %s1155
          %s1157 = smul.addr %s23, 16
          %s1158 = scalar_lea.hbm %s5, %s1157
          %s1160 = sshll.u32 %s1134, 4
          %s1161 = int_to_ptr.vmem [resolvable:$true] %s1160
          %1163 = dma.vmem_to_hbm [thread:$0]  %s1161, 16, %s1158, %s1132
        $region51: #{tpu_custom_call.1} parent=31 // pred_fallthru
          _
      $region32: #{tpu_custom_call.1} parent=5 // pred_fallthru
        _
      %p1164 = scmp.le.s32.totalorder 2, %s18
      // Predicated region
      $region52: #{tpu_custom_call.1} parent=5 // pred_check
        %p1165 = pneg %p1164
      $region53: #{tpu_custom_call.1} parent=5 // pred_check_branch
        %1167 = sbr.rel (%p1165) target = $region55
      $region54: #{tpu_custom_call.1} parent=5 // pred_region
        %s1168 = ssub.s32 %s18, 2
        // Predicated region
        $region56: #{tpu_custom_call.1} parent=54 // pred_check
          %p1169 = pneg %p115
        $region57: #{tpu_custom_call.1} parent=54 // pred_check_branch
          %1171 = sbr.rel (%p1169) target = $region59
        $region58: #{tpu_custom_call.1} parent=54 // pred_region
          %p1172 = scmp.lt.s32.totalorder %s24, 1
          %s1173 = scalar_select %p1172, %s24, 1
          %s1174 = smul.addr %s1173, 32
          %s1175 = smul.addr %s1174, 8
          %s1176 = scalar_lea.vmem %s3, %s1175
        $region59: #{tpu_custom_call.1} parent=54 // pred_fallthru
          _
        // Predicated region
        $region60: #{tpu_custom_call.1} parent=54 // pred_check
          %p1177 = pneg %p141
        $region61: #{tpu_custom_call.1} parent=54 // pred_check_branch
          %1179 = sbr.rel (%p1177) target = $region63
        $region62: #{tpu_custom_call.1} parent=54 // pred_region
          %s1180 = sand.u32 %s126, 1
          %s1181 = scalar_lea.sflag [#allocation3], %s1180
          %s1182 = sand.u32 %s126, 1
          %s1183 = scalar_lea.vmem [#allocation2], %s1182
          %1184 = dma.done %s1181, 16
        $region63: #{tpu_custom_call.1} parent=54 // pred_fallthru
          _
        // Predicated region
        $region64: #{tpu_custom_call.1} parent=54 // pred_check
          %p1185 = pneg %p167
        $region65: #{tpu_custom_call.1} parent=54 // pred_check_branch
          %1187 = sbr.rel (%p1185) target = $region67
        $region66: #{tpu_custom_call.1} parent=54 // pred_region
          %s1188 = sand.u32 %s152, 1
          %s1189 = scalar_lea.sflag [#allocation5], %s1188
          %s1190 = sand.u32 %s152, 1
          %s1191 = scalar_lea.vmem [#allocation4], %s1190
          %1192 = dma.done %s1189, 16
        $region67: #{tpu_custom_call.1} parent=54 // pred_fallthru
          _
      $region55: #{tpu_custom_call.1} parent=5 // pred_fallthru
        _
    $region6: #{tpu_custom_call.1} parent=1 // loop_footer
      %s22 = sadd.s32 1, %s18
    $region7: #{tpu_custom_call.1} parent=1 // loop_footer_branch
      %17 = sbr.rel target = $region3
    $region8: #{tpu_custom_call.1} parent=1 // loop_exit
      _
    %1193 = vsyncpa [#allocation3], 1
    %s1194 = scalar_lea.sflag [#allocation3], 1
    %1195 = vsyncpa %s1194, 1
    %1196 = vsyncpa [#allocation5], 1
    %s1197 = scalar_lea.sflag [#allocation5], 1
    %1198 = vsyncpa %s1197, 1

</llo_original>
